<compile_context>
chip_gen: v5e
topology: v5e:2x2
jax: 0.10.0
libtpu: 0.0.40
codegen_flags: <defaults>
</compile_context>

<pallas_src>
import jax
import jax.numpy as jnp
from jax.experimental import pallas as pl
from jax.experimental.pallas import tpu as pltpu

_LANE = 128


def _round_up(x, m):
    return (x + m - 1) // m * m


def madogram_forward(logf, w, *, tn_target=1024):
    """Pallas forward pass. logf: (dim, n) f32, w: (B, dim) f32 -> (B,) f32."""
    logf = logf.astype(jnp.float32)
    w = w.astype(jnp.float32)
    dim, n = logf.shape
    B, dim_w = w.shape
    assert dim_w == dim, (dim_w, dim)

    # ---- sample-axis (lane) tiling -----------------------------------------
    if n <= _LANE:
        tn = n                                      # single full-extent tile
    else:
        tn = min(_round_up(tn_target, _LANE), _round_up(n, _LANE))
    n_pad = _round_up(n, tn)
    if n_pad != n:
        # logF == 0 padding: exp(0 * 1/w) == 1 for every d -> max_d - mean_d == 0,
        # i.e. padded samples contribute exactly zero to the running sum.
        logf = jnp.pad(logf, ((0, 0), (0, n_pad - n)))
    n_tiles = n_pad // tn

    # ---- batch-block tiling (leading "parallel" axis; v7x megacore) --------
    tb = B
    if B >= 16 and B % 8 == 0:
        for cand in (128, 64, 32, 16, 8):
            if cand <= B // 2 and B % cand == 0:
                tb = cand
                break
    nb = B // tb

    inv_n = 1.0 / float(n)          # divide by the *real* sample count
    inv_dim = 1.0 / float(dim)

    def kernel(logf_ref, w_ref, out_ref, acc_ref, invw_ref):
        k = pl.program_id(1)                        # sample-tile index (reduction)

        @pl.when(k == 0)
        def _init():
            acc_ref[...] = jnp.zeros_like(acc_ref)
            invw_ref[...] = 1.0 / w_ref[...]        # hoist 1/w out of the exp arg

        logf_tile = logf_ref[...]                   # (dim, tn)
        inv_w = invw_ref[...]                       # (tb, dim)

        # Running max / sum over the component axis: never build (tb, dim, tn).
        fw = jnp.exp(logf_tile[0:1, :] * inv_w[:, 0:1])          # (tb, tn)
        run_max = fw
        run_sum = fw
        for d in range(1, dim):                     # dim is small & static
            fw = jnp.exp(logf_tile[d:d + 1, :] * inv_w[:, d:d + 1])
            run_max = jnp.maximum(run_max, fw)
            run_sum = run_sum + fw

        diff = run_max - run_sum * inv_dim                        # (tb, tn)
        acc_ref[...] += jnp.sum(diff, axis=1, keepdims=True)      # (tb, 1)

        @pl.when(k == pl.num_programs(1) - 1)
        def _finalize():
            v = acc_ref[...] * inv_n                              # (tb, 1)
            wv = w_ref[...]                                       # (tb, dim)
            c = jnp.mean(wv / (1.0 + wv), axis=1, keepdims=True)  # (tb, 1)
            out_ref[...] = (v + c) / (1.0 - v - c)                # single store

    out = pl.pallas_call(
        kernel,
        out_shape=jax.ShapeDtypeStruct((B, 1), jnp.float32),
        grid_spec=pltpu.PrefetchScalarGridSpec(
            num_scalar_prefetch=0,
            grid=(nb, n_tiles),
            in_specs=[
                pl.BlockSpec((dim, tn), lambda b, k: (0, k)),   # streamed logF
                pl.BlockSpec((tb, dim), lambda b, k: (b, 0)),   # tiny, resident
            ],
            out_specs=pl.BlockSpec((tb, 1), lambda b, k: (b, 0)),
            scratch_shapes=[
                pltpu.VMEM((tb, 1), jnp.float32),     # sum_n(max_d - mean_d)
                pltpu.VMEM((tb, dim), jnp.float32),   # 1/w per batch block
            ],
        ),
        compiler_params=pltpu.CompilerParams(
            dimension_semantics=("parallel", "arbitrary"),
        ),
    )(logf, w)
    return out[:, 0]  # (B,), matches torch .squeeze()


def make_logF(samples):
    """MetaCE.__init__ with est_F=None ('n+1'), survival=False, then .log()."""
    n_samples, dim = samples.shape
    s = samples.T[None, :, :]                            # (1, dim, n)
    order = jnp.argsort(s, axis=2)                       # ascending
    F_ = jnp.argsort(order, axis=2).astype(jnp.float32)  # ranks
    F = (F_ + 1.0) / (n_samples + 1.0)                   # 'n+1' empirical CDF
    return jnp.log(F)[0]                                 # (dim, n)


def reference_forward(logf, w):
    """Plain-JAX reference mirroring the PyTorch forward exactly."""
    fw = jnp.exp(logf[None, :, :] / w[:, :, None])                 # (B, dim, n)
    v = jnp.mean(jnp.max(fw, axis=1) - jnp.mean(fw, axis=1), axis=1)
    c = jnp.mean(w / (1.0 + w), axis=1)
    return (v + c) / (1.0 - v - c)


if __name__ == "__main__":
    key = jax.random.PRNGKey(0)
    k1, k2, k3, k4 = jax.random.split(key, 4)

    # Config A: tiny, single full-extent sample tile (n <= 128).
    samples_a = jax.random.uniform(k1, (16, 8), dtype=jnp.float32)
    w_a = jax.random.uniform(k2, (2, 8), dtype=jnp.float32, minval=0.1, maxval=1.0)
    w_a = w_a / jnp.sum(w_a, axis=1, keepdims=True)
    logf_a = make_logF(samples_a)                    # (8, 16)
    out_a = madogram_forward(logf_a, w_a)
    jax.block_until_ready(out_a)
    ref_a = reference_forward(logf_a, w_a)
    assert out_a.shape == (2,), out_a.shape
    assert jnp.allclose(out_a, ref_a, rtol=5e-5, atol=1e-5), (out_a, ref_a)

    # Config B: exercises the tiled/padded/multi-batch-block path
    # (n=200 -> two 128-wide sample tiles incl. 56 zero-padded columns,
    #  B=16 -> two batch blocks of 8 on the leading "parallel" axis).
    samples_b = jax.random.uniform(k3, (200, 8), dtype=jnp.float32)
    w_b = jax.random.uniform(k4, (16, 8), dtype=jnp.float32, minval=0.1, maxval=1.0)
    w_b = w_b / jnp.sum(w_b, axis=1, keepdims=True)
    logf_b = make_logF(samples_b)                    # (8, 200)
    out_b = madogram_forward(logf_b, w_b, tn_target=128)
    jax.block_until_ready(out_b)
    ref_b = reference_forward(logf_b, w_b)
    assert out_b.shape == (16,), out_b.shape
    assert jnp.allclose(out_b, ref_b, rtol=5e-5, atol=1e-5), (out_b, ref_b)

    print("KERNEL_OK")
</pallas_src>

<mosaic_0001>
module attributes {stable_mosaic.version = 11 : i64} {
  func.func @kernel(%arg0: i32, %arg1: i32, %arg2: memref<8x16xf32, #tpu.memory_space<vmem>>, %arg3: memref<2x8xf32, #tpu.memory_space<vmem>>, %arg4: memref<2x1xf32, #tpu.memory_space<vmem>>, %arg5: memref<2x1xf32, #tpu.memory_space<vmem>>, %arg6: memref<2x8xf32, #tpu.memory_space<vmem>>) attributes {dimension_semantics = [#tpu.dimension_semantics<parallel>, #tpu.dimension_semantics<arbitrary>], iteration_bounds = array<i64: 1, 1>, scalar_prefetch = 0 : i64, scratch_operands = 2 : i64, tpu.core_type = #tpu.core_type<tc>, window_params = [{transform_indices = @transform_0, window_bounds = array<i64: 8, 16>}, {transform_indices = @transform_1, window_bounds = array<i64: 2, 8>}, {transform_indices = @transform_2, window_bounds = array<i64: 2, 1>}]} {
    %c0_i32 = arith.constant 0 : i32
    %0 = arith.cmpi eq, %arg1, %c0_i32 : i32
    %1 = arith.extui %0 : i1 to i32
    %c0_i32_0 = arith.constant 0 : i32
    %2 = arith.cmpi ne, %1, %c0_i32_0 : i32
    scf.if %2 {
      %cst_11 = arith.constant 0.000000e+00 : f32
      %78 = vector.broadcast %cst_11 : f32 to vector<2x1xf32>
      %c0_12 = arith.constant 0 : index
      %c0_13 = arith.constant 0 : index
      %79 = vector.load %arg5[%c0_12, %c0_13] : memref<2x1xf32, #tpu.memory_space<vmem>>, vector<2x1xf32>
      tpu.vector_store %arg5[%c0_12, %c0_13], %78 {strides = array<i32>} : memref<2x1xf32, #tpu.memory_space<vmem>>, vector<2x1xf32>,
      %c0_14 = arith.constant 0 : index
      %c0_15 = arith.constant 0 : index
      %80 = vector.load %arg3[%c0_14, %c0_15] : memref<2x8xf32, #tpu.memory_space<vmem>>, vector<2x8xf32>
      %cst_16 = arith.constant 1.000000e+00 : f32
      %81 = vector.broadcast %cst_16 : f32 to vector<2x8xf32>
      %82 = arith.divf %81, %80 : vector<2x8xf32>
      %c0_17 = arith.constant 0 : index
      %c0_18 = arith.constant 0 : index
      %83 = vector.load %arg6[%c0_17, %c0_18] : memref<2x8xf32, #tpu.memory_space<vmem>>, vector<2x8xf32>
      tpu.vector_store %arg6[%c0_17, %c0_18], %82 {strides = array<i32>} : memref<2x8xf32, #tpu.memory_space<vmem>>, vector<2x8xf32>,
    } else {
    }
    %c0 = arith.constant 0 : index
    %c0_1 = arith.constant 0 : index
    %3 = vector.load %arg2[%c0, %c0_1] : memref<8x16xf32, #tpu.memory_space<vmem>>, vector<8x16xf32>
    %c0_2 = arith.constant 0 : index
    %c0_3 = arith.constant 0 : index
    %4 = vector.load %arg6[%c0_2, %c0_3] : memref<2x8xf32, #tpu.memory_space<vmem>>, vector<2x8xf32>
    %5 = vector.extract_strided_slice %3 {offsets = [0, 0], sizes = [1, 16], strides = [1, 1]} : vector<8x16xf32> to vector<1x16xf32>
    %6 = vector.extract_strided_slice %4 {offsets = [0, 0], sizes = [2, 1], strides = [1, 1]} : vector<2x8xf32> to vector<2x1xf32>
    %7 = vector.broadcast %5 : vector<1x16xf32> to vector<2x16xf32>
    %8 = vector.broadcast %6 : vector<2x1xf32> to vector<2x16xf32>
    %9 = arith.mulf %7, %8 : vector<2x16xf32>
    %10 = math.exp %9 : vector<2x16xf32>
    %11 = vector.extract_strided_slice %3 {offsets = [1, 0], sizes = [1, 16], strides = [1, 1]} : vector<8x16xf32> to vector<1x16xf32>
    %12 = vector.extract_strided_slice %4 {offsets = [0, 1], sizes = [2, 1], strides = [1, 1]} : vector<2x8xf32> to vector<2x1xf32>
    %13 = vector.broadcast %11 : vector<1x16xf32> to vector<2x16xf32>
    %14 = vector.broadcast %12 : vector<2x1xf32> to vector<2x16xf32>
    %15 = arith.mulf %13, %14 : vector<2x16xf32>
    %16 = math.exp %15 : vector<2x16xf32>
    %17 = arith.maximumf %10, %16 : vector<2x16xf32>
    %18 = arith.addf %10, %16 : vector<2x16xf32>
    %19 = vector.extract_strided_slice %3 {offsets = [2, 0], sizes = [1, 16], strides = [1, 1]} : vector<8x16xf32> to vector<1x16xf32>
    %20 = vector.extract_strided_slice %4 {offsets = [0, 2], sizes = [2, 1], strides = [1, 1]} : vector<2x8xf32> to vector<2x1xf32>
    %21 = vector.broadcast %19 : vector<1x16xf32> to vector<2x16xf32>
    %22 = vector.broadcast %20 : vector<2x1xf32> to vector<2x16xf32>
    %23 = arith.mulf %21, %22 : vector<2x16xf32>
    %24 = math.exp %23 : vector<2x16xf32>
    %25 = arith.maximumf %17, %24 : vector<2x16xf32>
    %26 = arith.addf %18, %24 : vector<2x16xf32>
    %27 = vector.extract_strided_slice %3 {offsets = [3, 0], sizes = [1, 16], strides = [1, 1]} : vector<8x16xf32> to vector<1x16xf32>
    %28 = vector.extract_strided_slice %4 {offsets = [0, 3], sizes = [2, 1], strides = [1, 1]} : vector<2x8xf32> to vector<2x1xf32>
    %29 = vector.broadcast %27 : vector<1x16xf32> to vector<2x16xf32>
    %30 = vector.broadcast %28 : vector<2x1xf32> to vector<2x16xf32>
    %31 = arith.mulf %29, %30 : vector<2x16xf32>
    %32 = math.exp %31 : vector<2x16xf32>
    %33 = arith.maximumf %25, %32 : vector<2x16xf32>
    %34 = arith.addf %26, %32 : vector<2x16xf32>
    %35 = vector.extract_strided_slice %3 {offsets = [4, 0], sizes = [1, 16], strides = [1, 1]} : vector<8x16xf32> to vector<1x16xf32>
    %36 = vector.extract_strided_slice %4 {offsets = [0, 4], sizes = [2, 1], strides = [1, 1]} : vector<2x8xf32> to vector<2x1xf32>
    %37 = vector.broadcast %35 : vector<1x16xf32> to vector<2x16xf32>
    %38 = vector.broadcast %36 : vector<2x1xf32> to vector<2x16xf32>
    %39 = arith.mulf %37, %38 : vector<2x16xf32>
    %40 = math.exp %39 : vector<2x16xf32>
    %41 = arith.maximumf %33, %40 : vector<2x16xf32>
    %42 = arith.addf %34, %40 : vector<2x16xf32>
    %43 = vector.extract_strided_slice %3 {offsets = [5, 0], sizes = [1, 16], strides = [1, 1]} : vector<8x16xf32> to vector<1x16xf32>
    %44 = vector.extract_strided_slice %4 {offsets = [0, 5], sizes = [2, 1], strides = [1, 1]} : vector<2x8xf32> to vector<2x1xf32>
    %45 = vector.broadcast %43 : vector<1x16xf32> to vector<2x16xf32>
    %46 = vector.broadcast %44 : vector<2x1xf32> to vector<2x16xf32>
    %47 = arith.mulf %45, %46 : vector<2x16xf32>
    %48 = math.exp %47 : vector<2x16xf32>
    %49 = arith.maximumf %41, %48 : vector<2x16xf32>
    %50 = arith.addf %42, %48 : vector<2x16xf32>
    %51 = vector.extract_strided_slice %3 {offsets = [6, 0], sizes = [1, 16], strides = [1, 1]} : vector<8x16xf32> to vector<1x16xf32>
    %52 = vector.extract_strided_slice %4 {offsets = [0, 6], sizes = [2, 1], strides = [1, 1]} : vector<2x8xf32> to vector<2x1xf32>
    %53 = vector.broadcast %51 : vector<1x16xf32> to vector<2x16xf32>
    %54 = vector.broadcast %52 : vector<2x1xf32> to vector<2x16xf32>
    %55 = arith.mulf %53, %54 : vector<2x16xf32>
    %56 = math.exp %55 : vector<2x16xf32>
    %57 = arith.maximumf %49, %56 : vector<2x16xf32>
    %58 = arith.addf %50, %56 : vector<2x16xf32>
    %59 = vector.extract_strided_slice %3 {offsets = [7, 0], sizes = [1, 16], strides = [1, 1]} : vector<8x16xf32> to vector<1x16xf32>
    %60 = vector.extract_strided_slice %4 {offsets = [0, 7], sizes = [2, 1], strides = [1, 1]} : vector<2x8xf32> to vector<2x1xf32>
    %61 = vector.broadcast %59 : vector<1x16xf32> to vector<2x16xf32>
    %62 = vector.broadcast %60 : vector<2x1xf32> to vector<2x16xf32>
    %63 = arith.mulf %61, %62 : vector<2x16xf32>
    %64 = math.exp %63 : vector<2x16xf32>
    %65 = arith.maximumf %57, %64 : vector<2x16xf32>
    %66 = arith.addf %58, %64 : vector<2x16xf32>
    %cst = arith.constant 1.250000e-01 : f32
    %67 = vector.broadcast %cst : f32 to vector<2x16xf32>
    %68 = arith.mulf %66, %67 : vector<2x16xf32>
    %69 = arith.subf %65, %68 : vector<2x16xf32>
    %c0_4 = arith.constant 0 : index
    %c0_5 = arith.constant 0 : index
    %70 = vector.load %arg5[%c0_4, %c0_5] : memref<2x1xf32, #tpu.memory_space<vmem>>, vector<2x1xf32>
    %cst_6 = arith.constant dense<0.000000e+00> : vector<2xf32>
    %71 = vector.multi_reduction <add>, %69, %cst_6 [1] : vector<2x16xf32> to vector<2xf32>
    %72 = vector.shape_cast %71 : vector<2xf32> to vector<2x1xf32>
    %73 = arith.addf %70, %72 : vector<2x1xf32>
    %c0_7 = arith.constant 0 : index
    %c0_8 = arith.constant 0 : index
    %74 = vector.load %arg5[%c0_7, %c0_8] : memref<2x1xf32, #tpu.memory_space<vmem>>, vector<2x1xf32>
    tpu.vector_store %arg5[%c0_7, %c0_8], %73 {strides = array<i32>} : memref<2x1xf32, #tpu.memory_space<vmem>>, vector<2x1xf32>,
    %c0_i32_9 = arith.constant 0 : i32
    %75 = arith.cmpi eq, %arg1, %c0_i32_9 : i32
    %76 = arith.extui %75 : i1 to i32
    %c0_i32_10 = arith.constant 0 : i32
    %77 = arith.cmpi ne, %76, %c0_i32_10 : i32
    scf.if %77 {
      %c0_11 = arith.constant 0 : index
      %c0_12 = arith.constant 0 : index
      %78 = vector.load %arg5[%c0_11, %c0_12] : memref<2x1xf32, #tpu.memory_space<vmem>>, vector<2x1xf32>
      %cst_13 = arith.constant 6.250000e-02 : f32
      %79 = vector.broadcast %cst_13 : f32 to vector<2x1xf32>
      %80 = arith.mulf %78, %79 : vector<2x1xf32>
      %c0_14 = arith.constant 0 : index
      %c0_15 = arith.constant 0 : index
      %81 = vector.load %arg3[%c0_14, %c0_15] : memref<2x8xf32, #tpu.memory_space<vmem>>, vector<2x8xf32>
      %cst_16 = arith.constant 1.000000e+00 : f32
      %82 = vector.broadcast %cst_16 : f32 to vector<2x8xf32>
      %83 = arith.addf %82, %81 : vector<2x8xf32>
      %84 = arith.divf %81, %83 : vector<2x8xf32>
      %cst_17 = arith.constant dense<0.000000e+00> : vector<2xf32>
      %85 = vector.multi_reduction <add>, %84, %cst_17 [1] : vector<2x8xf32> to vector<2xf32>
      %86 = vector.shape_cast %85 : vector<2xf32> to vector<2x1xf32>
      %cst_18 = arith.constant 8.000000e+00 : f32
      %87 = vector.broadcast %cst_18 : f32 to vector<2x1xf32>
      %88 = arith.divf %86, %87 : vector<2x1xf32>
      %89 = arith.addf %80, %88 : vector<2x1xf32>
      %cst_19 = arith.constant 1.000000e+00 : f32
      %90 = vector.broadcast %cst_19 : f32 to vector<2x1xf32>
      %91 = arith.subf %90, %80 : vector<2x1xf32>
      %92 = arith.subf %91, %88 : vector<2x1xf32>
      %93 = arith.divf %89, %92 : vector<2x1xf32>
      %c0_20 = arith.constant 0 : index
      %c0_21 = arith.constant 0 : index
      %94 = vector.load %arg4[%c0_20, %c0_21] : memref<2x1xf32, #tpu.memory_space<vmem>>, vector<2x1xf32>
      tpu.vector_store %arg4[%c0_20, %c0_21], %93 {strides = array<i32>} : memref<2x1xf32, #tpu.memory_space<vmem>>, vector<2x1xf32>,
    } else {
    }
    return
  }
  func.func @transform_0(%arg0: i32, %arg1: i32) -> (i32, i32) {
    %c0_i32 = arith.constant 0 : i32
    %c0_i32_0 = arith.constant 0 : i32
    return %c0_i32, %arg1 : i32, i32
  }
  func.func @transform_1(%arg0: i32, %arg1: i32) -> (i32, i32) {
    %c0_i32 = arith.constant 0 : i32
    %c0_i32_0 = arith.constant 0 : i32
    return %arg0, %c0_i32 : i32, i32
  }
  func.func @transform_2(%arg0: i32, %arg1: i32) -> (i32, i32) {
    %c0_i32 = arith.constant 0 : i32
    %c0_i32_0 = arith.constant 0 : i32
    return %arg0, %c0_i32 : i32, i32
  }
}

</mosaic_0001>

<llo_original>
// kernel: tpu_custom_call.1
$region0: #{tpu_custom_call.1}
  #allocation0 [shape = 'u32[]', space=smem, size = 0x4, offset = 0x4, fixed_abs, tag = 'smem constant byte address 0x4 - core index']
  #allocation1 [shape = 'u32[72,128]{1,0:T(1,128)}', space=vmem, size = 0x9000, scoped, tag = 'internal scratch']
  #allocation2 [shape = 'f32[2,1]{1,0:T(2,128)}', space=vmem, size = 0x400, scoped, tag = 'scratch operand']
  #allocation3 [shape = 'f32[2,8]{1,0:T(2,128)}', space=vmem, size = 0x400, scoped, tag = 'scratch operand']
  %s0 = inlined_call_operand.hbm [shape: f32[8,16], index: 0, kind: input, shape index: {}]
  %s1 = inlined_call_operand.hbm [shape: f32[2,8], index: 1, kind: input, shape index: {}]
  %s2 = inlined_call_operand.vmem [shape: f32[2,1], index: 2, kind: output, shape index: {}]
  %s3 = sld [smem:[#allocation0]]
  $region34: #{tpu_custom_call.1} parent=0
    _
  %s5 = ssub.s32 1, %s3
  %s6 = scalar_select 0, %s5, %s3
  $region1: #{tpu_custom_call.1} parent=0
    #allocation4 [shape = 'u8[4096]{0}', space=vmem, size = 0x1000, scoped, tag = 'input window, operand 0, single buffered']
    #allocation5 [shape = 's32[1]{0}', space=sflag, size = 0x4, scoped, tag = 'scoped memory for tpu_custom_call.1']
    #allocation6 [shape = 'u8[1024]{0}', space=vmem, size = 0x400, scoped, tag = 'input window, operand 1, single buffered']
    #allocation7 [shape = 's32[1]{0}', space=sflag, size = 0x4, scoped, tag = 'scoped memory for tpu_custom_call.1']
    %7 = vsyncpa [#allocation5], 0
    %8 = vsyncpa [#allocation7], 0
    // Predicated region
    $region2: #{tpu_custom_call.1} parent=1 // pred_check
      _
    $region3: #{tpu_custom_call.1} parent=1 // pred_check_branch
      %10 = sbr.rel (0) target = $region5
    $region4: #{tpu_custom_call.1} parent=1 // pred_region
      %12 = vsyncadd [#allocation5], 0
      %s14 = sshll.u32 %s0, 4
      %s15 = int_to_ptr.hbm [resolvable:$true] %s14
      %s16 = sshll.u32 [#allocation4], 4
      %s17 = int_to_ptr.vmem [resolvable:$true] %s16
      %19 = dma.hbm_to_vmem [thread:$0]  %s15, 128, %s17, [#allocation5]
    $region5: #{tpu_custom_call.1} parent=1 // pred_fallthru
      _
    // Predicated region
    $region6: #{tpu_custom_call.1} parent=1 // pred_check
      _
    $region7: #{tpu_custom_call.1} parent=1 // pred_check_branch
      %21 = sbr.rel (0) target = $region9
    $region8: #{tpu_custom_call.1} parent=1 // pred_region
      %23 = vsyncadd [#allocation7], 0
      %s25 = sshll.u32 %s1, 4
      %s26 = int_to_ptr.hbm [resolvable:$true] %s25
      %s27 = sshll.u32 [#allocation6], 4
      %s28 = int_to_ptr.vmem [resolvable:$true] %s27
      %30 = dma.hbm_to_vmem [thread:$0]  %s26, 32, %s28, [#allocation7]
    $region9: #{tpu_custom_call.1} parent=1 // pred_fallthru
      _
    // Predicated region
    $region10: #{tpu_custom_call.1} parent=1 // pred_check
      _
    $region11: #{tpu_custom_call.1} parent=1 // pred_check_branch
      %32 = sbr.rel (0) target = $region13
    $region12: #{tpu_custom_call.1} parent=1 // pred_region
      %34 = dma.done [#allocation5], 128
    $region13: #{tpu_custom_call.1} parent=1 // pred_fallthru
      _
    // Predicated region
    $region14: #{tpu_custom_call.1} parent=1 // pred_check
      _
    $region15: #{tpu_custom_call.1} parent=1 // pred_check_branch
      %36 = sbr.rel (0) target = $region17
    $region16: #{tpu_custom_call.1} parent=1 // pred_region
      %38 = dma.done [#allocation7], 32
    $region17: #{tpu_custom_call.1} parent=1 // pred_fallthru
      _
    %p39 = scmp.eq.s32.totalorder 0, 0
    // Predicated region
    $region18: #{tpu_custom_call.1} parent=1 // pred_check
      %p40 = pneg %p39
    $region19: #{tpu_custom_call.1} parent=1 // pred_check_branch
      %42 = sbr.rel (%p40) target = $region21
    $region20: #{tpu_custom_call.1} parent=1 // pred_region
      %vm43 = vcmask 1024
      %44 = vst.msk [vmem:[#allocation2] sm:$0x3] %vm43, 0.0
      %v45 = vld [vmem:[#allocation6] sm:$0x3]
      %v46 = vrcp.pop %v45
      %v47 = vmul.f32 %v45, %v46
      %v48 = vsub.f32 1.0, %v47
      %v49 = vmul.f32 %v46, %v48
      %v50 = vadd.f32 %v46, %v49
      %vm51 = vweird.f32 %v45
      %vm52 = vweird.f32 %v46
      %vm53 = vmor %vm51, %vm52
      %v54 = vsel %vm53, %v46, %v50
      %v55 = vand.u32 2147483647, %v45
      %vm56 = vcmp.eq.f32.partialorder %v55, 8.507059e+37
      %v57 = vand.u32 %v45, 2147483648
      %v58 = vor.u32 1.1754944e-38, %v57
      %v59 = vsel %vm56, %v58, %v54
      %v60 = vmul.f32 1.0, %v59
      %vm61 = vcmask 58368
      %62 = vst.msk [vmem:[#allocation3] sm:$0x3] %vm61, %v60
    $region21: #{tpu_custom_call.1} parent=1 // pred_fallthru
      _
    %v63 = vld [vmem:[#allocation4] sm:$0xff]
    %v64 = vld [vmem:[#allocation3] sm:$0x3]
    %v65 = vperm.slane %v63, 0
    %67 = vset.pattern.permute.xlu0 0
    %68 = vperm.xlu0 %67, %v64
    %v69 = vpop.permute.xlu0 %68
    %v71 = vmul.f32 %v65, %v69
    %v72 = vmul.f32 %v71, 1.442695
    %v73 = vpow.pop %v72
    %v74 = vperm.slane %v63, 1
    %75 = vset.pattern.permute.xlu0 1
    %76 = vperm.xlu0 %75, %v64
    %v77 = vpop.permute.xlu0 %76
    %v79 = vmul.f32 %v74, %v77
    %v80 = vmul.f32 %v79, 1.442695
    %v81 = vpow.pop %v80
    %v82 = vmax.f32 %v73, %v81
    %v83 = vadd.f32 %v73, %v81
    %v84 = vperm.slane %v63, 2
    %85 = vset.pattern.permute.xlu0 2
    %86 = vperm.xlu0 %85, %v64
    %v87 = vpop.permute.xlu0 %86
    %v89 = vmul.f32 %v84, %v87
    %v90 = vmul.f32 %v89, 1.442695
    %v91 = vpow.pop %v90
    %v92 = vmax.f32 %v82, %v91
    %v93 = vadd.f32 %v83, %v91
    %v94 = vperm.slane %v63, 3
    %95 = vset.pattern.permute.xlu0 3
    %96 = vperm.xlu0 %95, %v64
    %v97 = vpop.permute.xlu0 %96
    %v99 = vmul.f32 %v94, %v97
    %v100 = vmul.f32 %v99, 1.442695
    %v101 = vpow.pop %v100
    %v102 = vmax.f32 %v92, %v101
    %v103 = vadd.f32 %v93, %v101
    %v104 = vperm.slane %v63, 4
    %105 = vset.pattern.permute.xlu0 4
    %106 = vperm.xlu0 %105, %v64
    %v107 = vpop.permute.xlu0 %106
    %v109 = vmul.f32 %v104, %v107
    %v110 = vmul.f32 %v109, 1.442695
    %v111 = vpow.pop %v110
    %v112 = vmax.f32 %v102, %v111
    %v113 = vadd.f32 %v103, %v111
    %v114 = vperm.slane %v63, 5
    %115 = vset.pattern.permute.xlu0 5
    %116 = vperm.xlu0 %115, %v64
    %v117 = vpop.permute.xlu0 %116
    %v119 = vmul.f32 %v114, %v117
    %v120 = vmul.f32 %v119, 1.442695
    %v121 = vpow.pop %v120
    %v122 = vmax.f32 %v112, %v121
    %v123 = vadd.f32 %v113, %v121
    %v124 = vperm.slane %v63, 6
    %125 = vset.pattern.permute.xlu0 6
    %126 = vperm.xlu0 %125, %v64
    %v127 = vpop.permute.xlu0 %126
    %v129 = vmul.f32 %v124, %v127
    %v130 = vmul.f32 %v129, 1.442695
    %v131 = vpow.pop %v130
    %v132 = vmax.f32 %v122, %v131
    %v133 = vadd.f32 %v123, %v131
    %v134 = vperm.slane %v63, 7
    %135 = vset.pattern.permute.xlu0 7
    %136 = vperm.xlu0 %135, %v64
    %v137 = vpop.permute.xlu0 %136
    %v139 = vmul.f32 %v134, %v137
    %v140 = vmul.f32 %v139, 1.442695
    %v141 = vpow.pop %v140
    %v142 = vmax.f32 %v132, %v141
    %v143 = vadd.f32 %v133, %v141
    %v144 = vmul.f32 %v143, 0.125
    %v145 = vsub.f32 %v142, %v144
    %v146 = vld [vmem:[#allocation2] sm:$0x3]
    %vm147 = vcmask 123904
    %v148 = vsel %vm147, %v145, 0.0
    %149 = vadd.xlane.f32.xlu0 %v148
    %v150 = vpop.xlane.xlu0 %149
    %v151 = vadd.f32 %v146, %v150
    %vm152 = vcmask 1024
    %153 = vst.msk [vmem:[#allocation2] sm:$0x3] %vm152, %v151
    // Predicated region
    $region22: #{tpu_custom_call.1} parent=1 // pred_check
      %p154 = pneg %p39
    $region23: #{tpu_custom_call.1} parent=1 // pred_check_branch
      %156 = sbr.rel (%p154) target = $region25
    $region24: #{tpu_custom_call.1} parent=1 // pred_region
      %v157 = vld [vmem:[#allocation2] sm:$0x3]
      %v158 = vmul.f32 %v157, 0.0625
      %v159 = vld [vmem:[#allocation6] sm:$0x3]
      %v160 = vadd.f32 %v159, 1.0
      %v161 = vrcp.pop %v160
      %v162 = vmul.f32 %v160, %v161
      %v163 = vsub.f32 1.0, %v162
      %v164 = vmul.f32 %v161, %v163
      %v165 = vadd.f32 %v161, %v164
      %vm166 = vweird.f32 %v160
      %vm167 = vweird.f32 %v161
      %vm168 = vmor %vm166, %vm167
      %v169 = vsel %vm168, %v161, %v165
      %v170 = vand.u32 2147483647, %v160
      %vm171 = vcmp.eq.f32.partialorder %v170, 8.507059e+37
      %v172 = vand.u32 %v160, 2147483648
      %v173 = vor.u32 1.1754944e-38, %v172
      %v174 = vsel %vm171, %v173, %v169
      %v175 = vmul.f32 %v159, %v174
      %vm176 = vcmask 58368
      %v177 = vsel %vm176, %v175, 0.0
      %178 = vadd.xlane.f32.xlu0 %v177
      %v179 = vpop.xlane.xlu0 %178
      %v180 = vrcp.pop 8.0
      %v181 = vmul.f32 8.0, %v180
      %v182 = vsub.f32 1.0, %v181
      %v183 = vmul.f32 %v180, %v182
      %v184 = vadd.f32 %v180, %v183
      %vm185 = vweird.f32 %v180
      %v186 = vsel %vm185, %v180, %v184
      %v187 = vmul.f32 %v179, %v186
      %v188 = vadd.f32 %v158, %v187
      %v189 = vsub.f32 1.0, %v158
      %v190 = vsub.f32 %v189, %v187
      %v191 = vrcp.pop %v190
      %v192 = vmul.f32 %v190, %v191
      %v193 = vsub.f32 1.0, %v192
      %v194 = vmul.f32 %v191, %v193
      %v195 = vadd.f32 %v191, %v194
      %vm196 = vweird.f32 %v190
      %vm197 = vweird.f32 %v191
      %vm198 = vmor %vm196, %vm197
      %v199 = vsel %vm198, %v191, %v195
      %v200 = vand.u32 2147483647, %v190
      %vm201 = vcmp.eq.f32.partialorder %v200, 8.507059e+37
      %v202 = vand.u32 %v190, 2147483648
      %v203 = vor.u32 1.1754944e-38, %v202
      %v204 = vsel %vm201, %v203, %v199
      %v205 = vmul.f32 %v188, %v204
      %206 = vst.msk [vmem:[%s2] sm:$0x3] %vm152, %v205
    $region25: #{tpu_custom_call.1} parent=1 // pred_fallthru
      _
    // Predicated region
    $region26: #{tpu_custom_call.1} parent=1 // pred_check
      _
    $region27: #{tpu_custom_call.1} parent=1 // pred_check_branch
      %208 = sbr.rel (0) target = $region29
    $region28: #{tpu_custom_call.1} parent=1 // pred_region
      _
    $region29: #{tpu_custom_call.1} parent=1 // pred_fallthru
      _
    // Predicated region
    $region30: #{tpu_custom_call.1} parent=1 // pred_check
      _
    $region31: #{tpu_custom_call.1} parent=1 // pred_check_branch
      %210 = sbr.rel (0) target = $region33
    $region32: #{tpu_custom_call.1} parent=1 // pred_region
      _
    $region33: #{tpu_custom_call.1} parent=1 // pred_fallthru
      _
    %211 = vsyncpa [#allocation5], 1
    %212 = vsyncpa [#allocation7], 1

</llo_original>
